<compile_context>
chip_gen: v7x
topology: tpu7x:2x2x1
jax: 0.10.0
libtpu: 0.0.40
codegen_flags: <defaults>
</compile_context>

<pallas_src>
import jax
import jax.numpy as jnp
from jax.experimental import pallas as pl
from jax.experimental.pallas import tpu as pltpu


# ---------------- Pallas kernel ----------------
def ffn_kernel(x_ref, w13_ref, w2_ref, o_ref):
    """One row-tile of SwiGLU FFN.

    x_ref   : (TM, D)
    w13_ref : (D, 2*FF)   -- [w1^T | w3^T] fused
    w2_ref  : (FF, D)
    o_ref   : (TM, D)
    """
    ff = w2_ref.shape[0]

    x = x_ref[...]

    # Fused gate+up projection: one MXU matmul, lane-dense (TM, 2*FF) result, f32 accum.
    h = jnp.dot(x, w13_ref[...], preferred_element_type=jnp.float32)

    g = h[:, :ff]          # gate  (TM, FF)
    u = h[:, ff:]          # up    (TM, FF)

    # SiLU(gate) * up, elementwise in f32 on the VPU/EUP.
    act = (g * jax.nn.sigmoid(g)) * u

    # Down projection, f32 accumulation.
    o_ref[...] = jnp.dot(act.astype(w2_ref.dtype), w2_ref[...],
                         preferred_element_type=jnp.float32).astype(o_ref.dtype)


# ---------------- wrapper ----------------
def feed_forward(x, w1, w2, w3, *, compute_dtype=jnp.float32, max_block_rows=256):
    """SwiGLU FFN matching torch:  w2( silu(x @ w1.T) * (x @ w3.T) ).

    x  : (..., D)
    w1 : (FF, D)   (torch nn.Linear weight layout)
    w2 : (D, FF)
    w3 : (FF, D)
    compute_dtype: dtype fed to the MXU (e.g. jnp.bfloat16 on v6e/v7x); accumulation is f32.
    """
    *lead, D = x.shape
    FF = w1.shape[0]

    # Flatten all leading dims into rows: one big lane-dense slab instead of per-batch steps.
    x2 = x.reshape(-1, D)
    R = x2.shape[0]

    # Row tile: whole problem in one step when small, otherwise tile (multiple of 8 sublanes).
    if R <= max_block_rows:
        TM = max(8, -(-R // 8) * 8)
    else:
        TM = max_block_rows
    Rp = -(-R // TM) * TM
    if Rp != R:
        x2 = jnp.pad(x2, ((0, Rp - R), (0, 0)))

    # Fuse w1/w3 and pre-transpose all weights to (in, out) row-major matmul layout.
    w13_t = jnp.concatenate([w1, w3], axis=0).T.astype(compute_dtype)   # (D, 2*FF)
    w2_t = w2.T.astype(compute_dtype)                                   # (FF, D)
    x2 = x2.astype(compute_dtype)

    grid = (Rp // TM,)

    out = pl.pallas_call(
        ffn_kernel,
        out_shape=jax.ShapeDtypeStruct((Rp, D), x.dtype),
        grid_spec=pltpu.PrefetchScalarGridSpec(
            num_scalar_prefetch=0,
            grid=grid,
            in_specs=[
                pl.BlockSpec((TM, D), lambda i: (i, 0)),          # activations: tiled rows
                pl.BlockSpec((D, 2 * FF), lambda i: (0, 0)),      # fused w1|w3 (grid-invariant)
                pl.BlockSpec((FF, D), lambda i: (0, 0)),          # w2          (grid-invariant)
            ],
            out_specs=pl.BlockSpec((TM, D), lambda i: (i, 0)),
        ),
        compiler_params=pltpu.CompilerParams(
            dimension_semantics=("parallel",)),
    )(x2, w13_t, w2_t)

    return out[:R].reshape(*lead, D)


# ---------------- pure-JAX reference (mirrors the torch module) ----------------
def ref_forward(x, w1, w2, w3):
    return (jax.nn.silu(x @ w1.T) * (x @ w3.T)) @ w2.T


if __name__ == "__main__":
    # ModelArgs-consistent small config: dim=128, multiple_of=256, ffn_dim_multiplier=None
    DIM = 128
    MULTIPLE_OF = 256
    hidden = int(2 * (4 * DIM) / 3)
    FFN_DIM = MULTIPLE_OF * ((hidden + MULTIPLE_OF - 1) // MULTIPLE_OF)   # 512

    B, S = 2, 8
    key = jax.random.PRNGKey(0)
    k1, k2, k3, k4 = jax.random.split(key, 4)

    w1 = jax.random.normal(k1, (FFN_DIM, DIM), jnp.float32) * 0.05
    w2 = jax.random.normal(k2, (DIM, FFN_DIM), jnp.float32) * 0.05
    w3 = jax.random.normal(k3, (FFN_DIM, DIM), jnp.float32) * 0.05
    x = jax.random.normal(k4, (B, S, DIM), jnp.float32) * 0.5

    out = feed_forward(x, w1, w2, w3)          # f32 MXU path (exact vs. reference)
    out = jax.block_until_ready(out)

    ref = ref_forward(x, w1, w2, w3)
    err = float(jnp.max(jnp.abs(out - ref)))
    assert err < 2e-4, f"max abs error {err}"
    print("KERNEL_OK")
</pallas_src>

<mosaic_0001>
module attributes {stable_mosaic.version = 11 : i64} {
  func.func @ffn_kernel(%arg0: i32, %arg1: memref<16x128xf32, #tpu.memory_space<vmem>>, %arg2: memref<128x1024xf32, #tpu.memory_space<vmem>>, %arg3: memref<512x128xf32, #tpu.memory_space<vmem>>, %arg4: memref<16x128xf32, #tpu.memory_space<vmem>>) attributes {dimension_semantics = [#tpu.dimension_semantics<parallel>], iteration_bounds = array<i64: 1>, scalar_prefetch = 0 : i64, scratch_operands = 0 : i64, tpu.core_type = #tpu.core_type<tc>, window_params = [{transform_indices = @transform_0, window_bounds = array<i64: 16, 128>}, {pipeline_mode = #tpu.pipeline_mode<synchronous>, transform_indices = @transform_1, window_bounds = array<i64: 128, 1024>}, {pipeline_mode = #tpu.pipeline_mode<synchronous>, transform_indices = @transform_2, window_bounds = array<i64: 512, 128>}, {transform_indices = @transform_3, window_bounds = array<i64: 16, 128>}]} {
    %c0 = arith.constant 0 : index
    %c0_0 = arith.constant 0 : index
    %0 = vector.load %arg1[%c0, %c0_0] : memref<16x128xf32, #tpu.memory_space<vmem>>, vector<16x128xf32>
    %c0_1 = arith.constant 0 : index
    %c0_2 = arith.constant 0 : index
    %1 = vector.load %arg2[%c0_1, %c0_2] : memref<128x1024xf32, #tpu.memory_space<vmem>>, vector<128x1024xf32>
    %cst = arith.constant dense<0.000000e+00> : vector<16x1024xf32>
    %2 = tpu.matmul %0, %1, %cst {dimension_numbers = #tpu.dot_dimension_numbers<[1], [0], [0], [1], [0, 0, 1, 1], [], []>} : vector<16x128xf32>, vector<128x1024xf32>, vector<16x1024xf32> -> vector<16x1024xf32>
    %3 = vector.extract_strided_slice %2 {offsets = [0, 0], sizes = [16, 512], strides = [1, 1]} : vector<16x1024xf32> to vector<16x512xf32>
    %4 = vector.extract_strided_slice %2 {offsets = [0, 512], sizes = [16, 512], strides = [1, 1]} : vector<16x1024xf32> to vector<16x512xf32>
    %5 = arith.negf %3 : vector<16x512xf32>
    %6 = math.exp %5 : vector<16x512xf32>
    %cst_3 = arith.constant 1.000000e+00 : f32
    %7 = vector.broadcast %cst_3 : f32 to vector<16x512xf32>
    %8 = arith.addf %7, %6 : vector<16x512xf32>
    %9 = arith.divf %7, %8 : vector<16x512xf32>
    %10 = arith.mulf %3, %9 : vector<16x512xf32>
    %11 = arith.mulf %10, %4 : vector<16x512xf32>
    %c0_4 = arith.constant 0 : index
    %c0_5 = arith.constant 0 : index
    %12 = vector.load %arg3[%c0_4, %c0_5] : memref<512x128xf32, #tpu.memory_space<vmem>>, vector<512x128xf32>
    %cst_6 = arith.constant dense<0.000000e+00> : vector<16x128xf32>
    %13 = tpu.matmul %11, %12, %cst_6 {dimension_numbers = #tpu.dot_dimension_numbers<[1], [0], [0], [1], [0, 0, 1, 1], [], []>} : vector<16x512xf32>, vector<512x128xf32>, vector<16x128xf32> -> vector<16x128xf32>
    %c0_7 = arith.constant 0 : index
    %c0_8 = arith.constant 0 : index
    %14 = vector.load %arg4[%c0_7, %c0_8] : memref<16x128xf32, #tpu.memory_space<vmem>>, vector<16x128xf32>
    tpu.vector_store %arg4[%c0_7, %c0_8], %13 {strides = array<i32>} : memref<16x128xf32, #tpu.memory_space<vmem>>, vector<16x128xf32>,
    return
  }
  func.func @transform_0(%arg0: i32) -> (i32, i32) {
    %c0_i32 = arith.constant 0 : i32
    %c0_i32_0 = arith.constant 0 : i32
    return %arg0, %c0_i32 : i32, i32
  }
  func.func @transform_1(%arg0: i32) -> (i32, i32) {
    %c0_i32 = arith.constant 0 : i32
    %c0_i32_0 = arith.constant 0 : i32
    %c0_i32_1 = arith.constant 0 : i32
    return %c0_i32, %c0_i32_0 : i32, i32
  }
  func.func @transform_2(%arg0: i32) -> (i32, i32) {
    %c0_i32 = arith.constant 0 : i32
    %c0_i32_0 = arith.constant 0 : i32
    %c0_i32_1 = arith.constant 0 : i32
    return %c0_i32, %c0_i32_0 : i32, i32
  }
  func.func @transform_3(%arg0: i32) -> (i32, i32) {
    %c0_i32 = arith.constant 0 : i32
    %c0_i32_0 = arith.constant 0 : i32
    return %arg0, %c0_i32 : i32, i32
  }
}

</mosaic_0001>

<llo_original>
// kernel: tpu_custom_call.1
$region0: #{tpu_custom_call.1}
  #allocation0 [shape = 'u32[]', space=smem, size = 0x4, offset = 0x4, fixed_abs, tag = 'smem constant byte address 0x4 - core index']
  #allocation1 [shape = 'u32[144,128]{1,0:T(1,128)}', space=vmem, size = 0x12000, scoped, tag = 'internal scratch']
  %s0 = inlined_call_operand.hbm [shape: f32[16,128], index: 0, kind: input, shape index: {}]
  %s1 = inlined_call_operand.hbm [shape: f32[128,1024], index: 1, kind: input, shape index: {}]
  %s2 = inlined_call_operand.hbm [shape: f32[512,128], index: 2, kind: input, shape index: {}]
  %s3 = inlined_call_operand.hbm [shape: f32[16,128], index: 3, kind: output, shape index: {}]
  %s4 = sld [smem:[#allocation0]]
  $region34: #{tpu_custom_call.1} parent=0
    _
  %s6 = ssub.s32 1, %s4
  %s7 = scalar_select 0, %s6, %s4
  $region1: #{tpu_custom_call.1} parent=0
    #allocation2 [shape = 'u8[8192]{0}', space=vmem, size = 0x2000, scoped, tag = 'input window, operand 0, single buffered']
    #allocation3 [shape = 's32[1]{0}', space=sflag, size = 0x4, scoped, tag = 'scoped memory for tpu_custom_call.1']
    #allocation4 [shape = 's32[1]{0}', space=sflag, size = 0x4, scoped, tag = 'scoped memory for tpu_custom_call.1']
    #allocation5 [shape = 'u8[524288]{0}', space=vmem, size = 0x80000, scoped, tag = 'input window, operand 1, single buffered']
    #allocation6 [shape = 's32[1]{0}', space=sflag, size = 0x4, scoped, tag = 'scoped memory for tpu_custom_call.1']
    #allocation7 [shape = 'u8[262144]{0}', space=vmem, size = 0x40000, scoped, tag = 'input window, operand 2, single buffered']
    #allocation8 [shape = 'u8[8192]{0}', space=vmem, size = 0x2000, scoped, tag = 'output window, operand 0, single buffered']
    %8 = vsyncpa [#allocation3], 0
    %9 = vsyncpa [#allocation6], 0
    %10 = vsyncpa [#allocation4], 0
    // Predicated region
    $region2: #{tpu_custom_call.1} parent=1 // pred_check
      _
    $region3: #{tpu_custom_call.1} parent=1 // pred_check_branch
      %12 = sbr.rel (0) target = $region5
    $region4: #{tpu_custom_call.1} parent=1 // pred_region
      %s14 = ssub.s32 256, 256
      %15 = vsyncadd [#allocation3], %s14
      %s16 = sshll.u32 [#allocation2], 4
      %s17 = int_to_ptr.vmem [resolvable:$true] %s16
      %22 = dma.hbm_to_vmem [thread:$0]  %s0, 256, %s17, [#allocation3], 128, 128, 8
    $region5: #{tpu_custom_call.1} parent=1 // pred_fallthru
      _
    // Predicated region
    $region6: #{tpu_custom_call.1} parent=1 // pred_check
      _
    $region7: #{tpu_custom_call.1} parent=1 // pred_check_branch
      %24 = sbr.rel (0) target = $region9
    $region8: #{tpu_custom_call.1} parent=1 // pred_region
      %s26 = ssub.s32 16384, 16384
      %27 = vsyncadd [#allocation6], %s26
      %s28 = sshll.u32 [#allocation5], 4
      %s29 = int_to_ptr.vmem [resolvable:$true] %s28
      %34 = dma.hbm_to_vmem [thread:$0]  %s1, 16384, %s29, [#allocation6], 1024, 1024, 64
    $region9: #{tpu_custom_call.1} parent=1 // pred_fallthru
      _
    // Predicated region
    $region10: #{tpu_custom_call.1} parent=1 // pred_check
      _
    $region11: #{tpu_custom_call.1} parent=1 // pred_check_branch
      %36 = sbr.rel (0) target = $region13
    $region12: #{tpu_custom_call.1} parent=1 // pred_region
      %s38 = ssub.s32 8192, 8192
      %39 = vsyncadd [#allocation6], %s38
      %s40 = sshll.u32 [#allocation7], 4
      %s41 = int_to_ptr.vmem [resolvable:$true] %s40
      %46 = dma.hbm_to_vmem [thread:$0]  %s2, 8192, %s41, [#allocation6], 128, 128, 8
    $region13: #{tpu_custom_call.1} parent=1 // pred_fallthru
      _
    // Predicated region
    $region14: #{tpu_custom_call.1} parent=1 // pred_check
      _
    $region15: #{tpu_custom_call.1} parent=1 // pred_check_branch
      %48 = sbr.rel (0) target = $region17
    $region16: #{tpu_custom_call.1} parent=1 // pred_region
      %49 = dma.done [#allocation3], 256
    $region17: #{tpu_custom_call.1} parent=1 // pred_fallthru
      _
    // Predicated region
    $region18: #{tpu_custom_call.1} parent=1 // pred_check
      _
    $region19: #{tpu_custom_call.1} parent=1 // pred_check_branch
      %51 = sbr.rel (0) target = $region21
    $region20: #{tpu_custom_call.1} parent=1 // pred_region
      %52 = dma.done [#allocation6], 16384
    $region21: #{tpu_custom_call.1} parent=1 // pred_fallthru
      _
    // Predicated region
    $region22: #{tpu_custom_call.1} parent=1 // pred_check
      _
    $region23: #{tpu_custom_call.1} parent=1 // pred_check_branch
      %54 = sbr.rel (0) target = $region25
    $region24: #{tpu_custom_call.1} parent=1 // pred_region
      %55 = dma.done [#allocation6], 8192
    $region25: #{tpu_custom_call.1} parent=1 // pred_fallthru
      _
    %v56 = vld [vmem:[#allocation2] sm:$0xff]
    %v57 = vld [vmem:[#allocation2 + $0x8] sm:$0xff]
    %v58 = vld [vmem:[#allocation5] sm:$0xff]
    %v59 = vld [vmem:[#allocation5 + $0x8] sm:$0xff]
    %v60 = vld [vmem:[#allocation5 + $0x10] sm:$0xff]
    %v61 = vld [vmem:[#allocation5 + $0x18] sm:$0xff]
    %v62 = vld [vmem:[#allocation5 + $0x20] sm:$0xff]
    %v63 = vld [vmem:[#allocation5 + $0x28] sm:$0xff]
    %v64 = vld [vmem:[#allocation5 + $0x30] sm:$0xff]
    %v65 = vld [vmem:[#allocation5 + $0x38] sm:$0xff]
    %v66 = vld [vmem:[#allocation5 + $0x40] sm:$0xff]
    %v67 = vld [vmem:[#allocation5 + $0x48] sm:$0xff]
    %v68 = vld [vmem:[#allocation5 + $0x50] sm:$0xff]
    %v69 = vld [vmem:[#allocation5 + $0x58] sm:$0xff]
    %v70 = vld [vmem:[#allocation5 + $0x60] sm:$0xff]
    %v71 = vld [vmem:[#allocation5 + $0x68] sm:$0xff]
    %v72 = vld [vmem:[#allocation5 + $0x70] sm:$0xff]
    %v73 = vld [vmem:[#allocation5 + $0x78] sm:$0xff]
    %v74 = vld [vmem:[#allocation5 + $0x80] sm:$0xff]
    %v75 = vld [vmem:[#allocation5 + $0x88] sm:$0xff]
    %v76 = vld [vmem:[#allocation5 + $0x90] sm:$0xff]
    %v77 = vld [vmem:[#allocation5 + $0x98] sm:$0xff]
    %v78 = vld [vmem:[#allocation5 + $0xa0] sm:$0xff]
    %v79 = vld [vmem:[#allocation5 + $0xa8] sm:$0xff]
    %v80 = vld [vmem:[#allocation5 + $0xb0] sm:$0xff]
    %v81 = vld [vmem:[#allocation5 + $0xb8] sm:$0xff]
    %v82 = vld [vmem:[#allocation5 + $0xc0] sm:$0xff]
    %v83 = vld [vmem:[#allocation5 + $0xc8] sm:$0xff]
    %v84 = vld [vmem:[#allocation5 + $0xd0] sm:$0xff]
    %v85 = vld [vmem:[#allocation5 + $0xd8] sm:$0xff]
    %v86 = vld [vmem:[#allocation5 + $0xe0] sm:$0xff]
    %v87 = vld [vmem:[#allocation5 + $0xe8] sm:$0xff]
    %v88 = vld [vmem:[#allocation5 + $0xf0] sm:$0xff]
    %v89 = vld [vmem:[#allocation5 + $0xf8] sm:$0xff]
    %v90 = vld [vmem:[#allocation5 + $0x100] sm:$0xff]
    %v91 = vld [vmem:[#allocation5 + $0x108] sm:$0xff]
    %v92 = vld [vmem:[#allocation5 + $0x110] sm:$0xff]
    %v93 = vld [vmem:[#allocation5 + $0x118] sm:$0xff]
    %v94 = vld [vmem:[#allocation5 + $0x120] sm:$0xff]
    %v95 = vld [vmem:[#allocation5 + $0x128] sm:$0xff]
    %v96 = vld [vmem:[#allocation5 + $0x130] sm:$0xff]
    %v97 = vld [vmem:[#allocation5 + $0x138] sm:$0xff]
    %v98 = vld [vmem:[#allocation5 + $0x140] sm:$0xff]
    %v99 = vld [vmem:[#allocation5 + $0x148] sm:$0xff]
    %v100 = vld [vmem:[#allocation5 + $0x150] sm:$0xff]
    %v101 = vld [vmem:[#allocation5 + $0x158] sm:$0xff]
    %v102 = vld [vmem:[#allocation5 + $0x160] sm:$0xff]
    %v103 = vld [vmem:[#allocation5 + $0x168] sm:$0xff]
    %v104 = vld [vmem:[#allocation5 + $0x170] sm:$0xff]
    %v105 = vld [vmem:[#allocation5 + $0x178] sm:$0xff]
    %v106 = vld [vmem:[#allocation5 + $0x180] sm:$0xff]
    %v107 = vld [vmem:[#allocation5 + $0x188] sm:$0xff]
    %v108 = vld [vmem:[#allocation5 + $0x190] sm:$0xff]
    %v109 = vld [vmem:[#allocation5 + $0x198] sm:$0xff]
    %v110 = vld [vmem:[#allocation5 + $0x1a0] sm:$0xff]
    %v111 = vld [vmem:[#allocation5 + $0x1a8] sm:$0xff]
    %v112 = vld [vmem:[#allocation5 + $0x1b0] sm:$0xff]
    %v113 = vld [vmem:[#allocation5 + $0x1b8] sm:$0xff]
    %v114 = vld [vmem:[#allocation5 + $0x1c0] sm:$0xff]
    %v115 = vld [vmem:[#allocation5 + $0x1c8] sm:$0xff]
    %v116 = vld [vmem:[#allocation5 + $0x1d0] sm:$0xff]
    %v117 = vld [vmem:[#allocation5 + $0x1d8] sm:$0xff]
    %v118 = vld [vmem:[#allocation5 + $0x1e0] sm:$0xff]
    %v119 = vld [vmem:[#allocation5 + $0x1e8] sm:$0xff]
    %v120 = vld [vmem:[#allocation5 + $0x1f0] sm:$0xff]
    %v121 = vld [vmem:[#allocation5 + $0x1f8] sm:$0xff]
    %v122 = vld [vmem:[#allocation5 + $0x200] sm:$0xff]
    %v123 = vld [vmem:[#allocation5 + $0x208] sm:$0xff]
    %v124 = vld [vmem:[#allocation5 + $0x210] sm:$0xff]
    %v125 = vld [vmem:[#allocation5 + $0x218] sm:$0xff]
    %v126 = vld [vmem:[#allocation5 + $0x220] sm:$0xff]
    %v127 = vld [vmem:[#allocation5 + $0x228] sm:$0xff]
    %v128 = vld [vmem:[#allocation5 + $0x230] sm:$0xff]
    %v129 = vld [vmem:[#allocation5 + $0x238] sm:$0xff]
    %v130 = vld [vmem:[#allocation5 + $0x240] sm:$0xff]
    %v131 = vld [vmem:[#allocation5 + $0x248] sm:$0xff]
    %v132 = vld [vmem:[#allocation5 + $0x250] sm:$0xff]
    %v133 = vld [vmem:[#allocation5 + $0x258] sm:$0xff]
    %v134 = vld [vmem:[#allocation5 + $0x260] sm:$0xff]
    %v135 = vld [vmem:[#allocation5 + $0x268] sm:$0xff]
    %v136 = vld [vmem:[#allocation5 + $0x270] sm:$0xff]
    %v137 = vld [vmem:[#allocation5 + $0x278] sm:$0xff]
    %v138 = vld [vmem:[#allocation5 + $0x280] sm:$0xff]
    %v139 = vld [vmem:[#allocation5 + $0x288] sm:$0xff]
    %v140 = vld [vmem:[#allocation5 + $0x290] sm:$0xff]
    %v141 = vld [vmem:[#allocation5 + $0x298] sm:$0xff]
    %v142 = vld [vmem:[#allocation5 + $0x2a0] sm:$0xff]
    %v143 = vld [vmem:[#allocation5 + $0x2a8] sm:$0xff]
    %v144 = vld [vmem:[#allocation5 + $0x2b0] sm:$0xff]
    %v145 = vld [vmem:[#allocation5 + $0x2b8] sm:$0xff]
    %v146 = vld [vmem:[#allocation5 + $0x2c0] sm:$0xff]
    %v147 = vld [vmem:[#allocation5 + $0x2c8] sm:$0xff]
    %v148 = vld [vmem:[#allocation5 + $0x2d0] sm:$0xff]
    %v149 = vld [vmem:[#allocation5 + $0x2d8] sm:$0xff]
    %v150 = vld [vmem:[#allocation5 + $0x2e0] sm:$0xff]
    %v151 = vld [vmem:[#allocation5 + $0x2e8] sm:$0xff]
    %v152 = vld [vmem:[#allocation5 + $0x2f0] sm:$0xff]
    %v153 = vld [vmem:[#allocation5 + $0x2f8] sm:$0xff]
    %v154 = vld [vmem:[#allocation5 + $0x300] sm:$0xff]
    %v155 = vld [vmem:[#allocation5 + $0x308] sm:$0xff]
    %v156 = vld [vmem:[#allocation5 + $0x310] sm:$0xff]
    %v157 = vld [vmem:[#allocation5 + $0x318] sm:$0xff]
    %v158 = vld [vmem:[#allocation5 + $0x320] sm:$0xff]
    %v159 = vld [vmem:[#allocation5 + $0x328] sm:$0xff]
    %v160 = vld [vmem:[#allocation5 + $0x330] sm:$0xff]
    %v161 = vld [vmem:[#allocation5 + $0x338] sm:$0xff]
    %v162 = vld [vmem:[#allocation5 + $0x340] sm:$0xff]
    %v163 = vld [vmem:[#allocation5 + $0x348] sm:$0xff]
    %v164 = vld [vmem:[#allocation5 + $0x350] sm:$0xff]
    %v165 = vld [vmem:[#allocation5 + $0x358] sm:$0xff]
    %v166 = vld [vmem:[#allocation5 + $0x360] sm:$0xff]
    %v167 = vld [vmem:[#allocation5 + $0x368] sm:$0xff]
    %v168 = vld [vmem:[#allocation5 + $0x370] sm:$0xff]
    %v169 = vld [vmem:[#allocation5 + $0x378] sm:$0xff]
    %v170 = vld [vmem:[#allocation5 + $0x380] sm:$0xff]
    %v171 = vld [vmem:[#allocation5 + $0x388] sm:$0xff]
    %v172 = vld [vmem:[#allocation5 + $0x390] sm:$0xff]
    %v173 = vld [vmem:[#allocation5 + $0x398] sm:$0xff]
    %v174 = vld [vmem:[#allocation5 + $0x3a0] sm:$0xff]
    %v175 = vld [vmem:[#allocation5 + $0x3a8] sm:$0xff]
    %v176 = vld [vmem:[#allocation5 + $0x3b0] sm:$0xff]
    %v177 = vld [vmem:[#allocation5 + $0x3b8] sm:$0xff]
    %v178 = vld [vmem:[#allocation5 + $0x3c0] sm:$0xff]
    %v179 = vld [vmem:[#allocation5 + $0x3c8] sm:$0xff]
    %v180 = vld [vmem:[#allocation5 + $0x3d0] sm:$0xff]
    %v181 = vld [vmem:[#allocation5 + $0x3d8] sm:$0xff]
    %v182 = vld [vmem:[#allocation5 + $0x3e0] sm:$0xff]
    %v183 = vld [vmem:[#allocation5 + $0x3e8] sm:$0xff]
    %v184 = vld [vmem:[#allocation5 + $0x3f0] sm:$0xff]
    %v185 = vld [vmem:[#allocation5 + $0x3f8] sm:$0xff]
    %186 = vmatprep.subr.mxu0 %v59
    %187 = vmatpush1.msra.mxu0 %v58
    %188 = vmatprep.subr.mxu0 %v67
    %189 = vmatpush1.msra.mxu0 %v66
    %190 = vmatprep.subr.mxu0 %v75
    %191 = vmatpush1.msra.mxu0 %v74
    %192 = vmatprep.subr.mxu0 %v83
    %193 = vmatpush1.msra.mxu0 %v82
    %194 = vmatprep.subr.mxu0 %v91
    %195 = vmatpush1.msra.mxu0 %v90
    %196 = vmatprep.subr.mxu0 %v99
    %197 = vmatpush1.msra.mxu0 %v98
    %198 = vmatprep.subr.mxu0 %v107
    %199 = vmatpush1.msra.mxu0 %v106
    %200 = vmatprep.subr.mxu0 %v115
    %201 = vmatpush1.msra.mxu0 %v114
    %202 = vmatprep.subr.mxu0 %v123
    %203 = vmatpush1.msra.mxu0 %v122
    %204 = vmatprep.subr.mxu0 %v131
    %205 = vmatpush1.msra.mxu0 %v130
    %206 = vmatprep.subr.mxu0 %v139
    %207 = vmatpush1.msra.mxu0 %v138
    %208 = vmatprep.subr.mxu0 %v147
    %209 = vmatpush1.msra.mxu0 %v146
    %210 = vmatprep.subr.mxu0 %v155
    %211 = vmatpush1.msra.mxu0 %v154
    %212 = vmatprep.subr.mxu0 %v163
    %213 = vmatpush1.msra.mxu0 %v162
    %214 = vmatprep.subr.mxu0 %v171
    %215 = vmatpush1.msra.mxu0 %v170
    %216 = vmatprep.subr.mxu0 %v179
    %217 = vmatpush1.msra.mxu0 %v178
    %218 = vmatprep.subr.mxu0 0.0
    %219 = vmatpush1.msra.mxu0 0.0
    %220 = vmatprep.subr.mxu0 0.0
    %221 = vmatpush1.msra.mxu0 0.0
    %222 = vmatprep.subr.mxu0 0.0
    %223 = vmatpush1.msra.mxu0 0.0
    %224 = vmatprep.subr.mxu0 0.0
    %225 = vmatpush1.msra.mxu0 0.0
    %226 = vmatprep.subr.mxu0 0.0
    %227 = vmatpush1.msra.mxu0 0.0
    %228 = vmatprep.subr.mxu0 0.0
    %229 = vmatpush1.msra.mxu0 0.0
    %230 = vmatprep.subr.mxu0 0.0
    %231 = vmatpush1.msra.mxu0 0.0
    %232 = vmatprep.subr.mxu0 0.0
    %233 = vmatpush1.msra.mxu0 0.0
    %234 = vmatprep.subr.mxu0 0.0
    %235 = vmatpush1.msra.mxu0 0.0
    %236 = vmatprep.subr.mxu0 0.0
    %237 = vmatpush1.msra.mxu0 0.0
    %238 = vmatprep.subr.mxu0 0.0
    %239 = vmatpush1.msra.mxu0 0.0
    %240 = vmatprep.subr.mxu0 0.0
    %241 = vmatpush1.msra.mxu0 0.0
    %242 = vmatprep.subr.mxu0 0.0
    %243 = vmatpush1.msra.mxu0 0.0
    %244 = vmatprep.subr.mxu0 0.0
    %245 = vmatpush1.msra.mxu0 0.0
    %246 = vmatprep.subr.mxu0 0.0
    %247 = vmatpush1.msra.mxu0 0.0
    %248 = vmatprep.subr.mxu0 0.0
    %249 = vmatpush1.msra.mxu0 0.0
    %250 = vmatprep.mubr.f32.mxu0 0.0
    %251 = vmatmul.mubr.f32.gmra.mrb[0].mxu0 %v56
    %v252 = vpop.f32.mrb[0].mxu0
    %v253 = vadd.f32 0.0, %v252
    %v254 = vpop.f32.mrb[0].mxu0
    %v255 = vadd.f32 0.0, %v254
    %256 = vmatprep.mubr.f32.mxu0 0.0
    %257 = vmatmul.mubr.f32.gmra.mrb[0].mxu0 %v57
    %v258 = vpop.f32.mrb[0].mxu0
    %v259 = vadd.f32 0.0, %v258
    %v260 = vpop.f32.mrb[0].mxu0
    %v261 = vadd.f32 0.0, %v260
    %262 = vdwg.mxu0
    %263 = vmatprep.subr.mxu0 %v61
    %264 = vmatpush1.msra.mxu0 %v60
    %265 = vmatprep.subr.mxu0 %v69
    %266 = vmatpush1.msra.mxu0 %v68
    %267 = vmatprep.subr.mxu0 %v77
    %268 = vmatpush1.msra.mxu0 %v76
    %269 = vmatprep.subr.mxu0 %v85
    %270 = vmatpush1.msra.mxu0 %v84
    %271 = vmatprep.subr.mxu0 %v93
    %272 = vmatpush1.msra.mxu0 %v92
    %273 = vmatprep.subr.mxu0 %v101
    %274 = vmatpush1.msra.mxu0 %v100
    %275 = vmatprep.subr.mxu0 %v109
    %276 = vmatpush1.msra.mxu0 %v108
    %277 = vmatprep.subr.mxu0 %v117
    %278 = vmatpush1.msra.mxu0 %v116
    %279 = vmatprep.subr.mxu0 %v125
    %280 = vmatpush1.msra.mxu0 %v124
    %281 = vmatprep.subr.mxu0 %v133
    %282 = vmatpush1.msra.mxu0 %v132
    %283 = vmatprep.subr.mxu0 %v141
    %284 = vmatpush1.msra.mxu0 %v140
    %285 = vmatprep.subr.mxu0 %v149
    %286 = vmatpush1.msra.mxu0 %v148
    %287 = vmatprep.subr.mxu0 %v157
    %288 = vmatpush1.msra.mxu0 %v156
    %289 = vmatprep.subr.mxu0 %v165
    %290 = vmatpush1.msra.mxu0 %v164
    %291 = vmatprep.subr.mxu0 %v173
    %292 = vmatpush1.msra.mxu0 %v172
    %293 = vmatprep.subr.mxu0 %v181
    %294 = vmatpush1.msra.mxu0 %v180
    %295 = vmatprep.subr.mxu0 0.0
    %296 = vmatpush1.msra.mxu0 0.0
    %297 = vmatprep.subr.mxu0 0.0
    %298 = vmatpush1.msra.mxu0 0.0
    %299 = vmatprep.subr.mxu0 0.0
    %300 = vmatpush1.msra.mxu0 0.0
    %301 = vmatprep.subr.mxu0 0.0
    %302 = vmatpush1.msra.mxu0 0.0
    %303 = vmatprep.subr.mxu0 0.0
    %304 = vmatpush1.msra.mxu0 0.0
    %305 = vmatprep.subr.mxu0 0.0
    %306 = vmatpush1.msra.mxu0 0.0
    %307 = vmatprep.subr.mxu0 0.0
    %308 = vmatpush1.msra.mxu0 0.0
    %309 = vmatprep.subr.mxu0 0.0
    %310 = vmatpush1.msra.mxu0 0.0
    %311 = vmatprep.subr.mxu0 0.0
    %312 = vmatpush1.msra.mxu0 0.0
    %313 = vmatprep.subr.mxu0 0.0
    %314 = vmatpush1.msra.mxu0 0.0
    %315 = vmatprep.subr.mxu0 0.0
    %316 = vmatpush1.msra.mxu0 0.0
    %317 = vmatprep.subr.mxu0 0.0
    %318 = vmatpush1.msra.mxu0 0.0
    %319 = vmatprep.subr.mxu0 0.0
    %320 = vmatpush1.msra.mxu0 0.0
    %321 = vmatprep.subr.mxu0 0.0
    %322 = vmatpush1.msra.mxu0 0.0
    %323 = vmatprep.subr.mxu0 0.0
    %324 = vmatpush1.msra.mxu0 0.0
    %325 = vmatprep.subr.mxu0 0.0
    %326 = vmatpush1.msra.mxu0 0.0
    %327 = vmatprep.mubr.f32.mxu0 0.0
    %328 = vmatmul.mubr.f32.gmra.mrb[0].mxu0 %v56
    %v329 = vpop.f32.mrb[0].mxu0
    %v330 = vadd.f32 0.0, %v329
    %v331 = vpop.f32.mrb[0].mxu0
    %v332 = vadd.f32 0.0, %v331
    %333 = vmatprep.mubr.f32.mxu0 0.0
    %334 = vmatmul.mubr.f32.gmra.mrb[0].mxu0 %v57
    %v335 = vpop.f32.mrb[0].mxu0
    %v336 = vadd.f32 0.0, %v335
    %v337 = vpop.f32.mrb[0].mxu0
    %v338 = vadd.f32 0.0, %v337
    %339 = vdwg.mxu0
    %340 = vmatprep.subr.mxu0 %v63
    %341 = vmatpush1.msra.mxu0 %v62
    %342 = vmatprep.subr.mxu0 %v71
    %343 = vmatpush1.msra.mxu0 %v70
    %344 = vmatprep.subr.mxu0 %v79
    %345 = vmatpush1.msra.mxu0 %v78
    %346 = vmatprep.subr.mxu0 %v87
    %347 = vmatpush1.msra.mxu0 %v86
    %348 = vmatprep.subr.mxu0 %v95
    %349 = vmatpush1.msra.mxu0 %v94
    %350 = vmatprep.subr.mxu0 %v103
    %351 = vmatpush1.msra.mxu0 %v102
    %352 = vmatprep.subr.mxu0 %v111
    %353 = vmatpush1.msra.mxu0 %v110
    %354 = vmatprep.subr.mxu0 %v119
    %355 = vmatpush1.msra.mxu0 %v118
    %356 = vmatprep.subr.mxu0 %v127
    %357 = vmatpush1.msra.mxu0 %v126
    %358 = vmatprep.subr.mxu0 %v135
    %359 = vmatpush1.msra.mxu0 %v134
    %360 = vmatprep.subr.mxu0 %v143
    %361 = vmatpush1.msra.mxu0 %v142
    %362 = vmatprep.subr.mxu0 %v151
    %363 = vmatpush1.msra.mxu0 %v150
    %364 = vmatprep.subr.mxu0 %v159
    %365 = vmatpush1.msra.mxu0 %v158
    %366 = vmatprep.subr.mxu0 %v167
    %367 = vmatpush1.msra.mxu0 %v166
    %368 = vmatprep.subr.mxu0 %v175
    %369 = vmatpush1.msra.mxu0 %v174
    %370 = vmatprep.subr.mxu0 %v183
    %371 = vmatpush1.msra.mxu0 %v182
    %372 = vmatprep.subr.mxu0 0.0
    %373 = vmatpush1.msra.mxu0 0.0
    %374 = vmatprep.subr.mxu0 0.0
    %375 = vmatpush1.msra.mxu0 0.0
    %376 = vmatprep.subr.mxu0 0.0
    %377 = vmatpush1.msra.mxu0 0.0
    %378 = vmatprep.subr.mxu0 0.0
    %379 = vmatpush1.msra.mxu0 0.0
    %380 = vmatprep.subr.mxu0 0.0
    %381 = vmatpush1.msra.mxu0 0.0
    %382 = vmatprep.subr.mxu0 0.0
    %383 = vmatpush1.msra.mxu0 0.0
    %384 = vmatprep.subr.mxu0 0.0
    %385 = vmatpush1.msra.mxu0 0.0
    %386 = vmatprep.subr.mxu0 0.0
    %387 = vmatpush1.msra.mxu0 0.0
    %388 = vmatprep.subr.mxu0 0.0
    %389 = vmatpush1.msra.mxu0 0.0
    %390 = vmatprep.subr.mxu0 0.0
    %391 = vmatpush1.msra.mxu0 0.0
    %392 = vmatprep.subr.mxu0 0.0
    %393 = vmatpush1.msra.mxu0 0.0
    %394 = vmatprep.subr.mxu0 0.0
    %395 = vmatpush1.msra.mxu0 0.0
    %396 = vmatprep.subr.mxu0 0.0
    %397 = vmatpush1.msra.mxu0 0.0
    %398 = vmatprep.subr.mxu0 0.0
    %399 = vmatpush1.msra.mxu0 0.0
    %400 = vmatprep.subr.mxu0 0.0
    %401 = vmatpush1.msra.mxu0 0.0
    %402 = vmatprep.subr.mxu0 0.0
    %403 = vmatpush1.msra.mxu0 0.0
    %404 = vmatprep.mubr.f32.mxu0 0.0
    %405 = vmatmul.mubr.f32.gmra.mrb[0].mxu0 %v56
    %v406 = vpop.f32.mrb[0].mxu0
    %v407 = vadd.f32 0.0, %v406
    %v408 = vpop.f32.mrb[0].mxu0
    %v409 = vadd.f32 0.0, %v408
    %410 = vmatprep.mubr.f32.mxu0 0.0
    %411 = vmatmul.mubr.f32.gmra.mrb[0].mxu0 %v57
    %v412 = vpop.f32.mrb[0].mxu0
    %v413 = vadd.f32 0.0, %v412
    %v414 = vpop.f32.mrb[0].mxu0
    %v415 = vadd.f32 0.0, %v414
    %416 = vdwg.mxu0
    %417 = vmatprep.subr.mxu0 %v65
    %418 = vmatpush1.msra.mxu0 %v64
    %419 = vmatprep.subr.mxu0 %v73
    %420 = vmatpush1.msra.mxu0 %v72
    %421 = vmatprep.subr.mxu0 %v81
    %422 = vmatpush1.msra.mxu0 %v80
    %423 = vmatprep.subr.mxu0 %v89
    %424 = vmatpush1.msra.mxu0 %v88
    %425 = vmatprep.subr.mxu0 %v97
    %426 = vmatpush1.msra.mxu0 %v96
    %427 = vmatprep.subr.mxu0 %v105
    %428 = vmatpush1.msra.mxu0 %v104
    %429 = vmatprep.subr.mxu0 %v113
    %430 = vmatpush1.msra.mxu0 %v112
    %431 = vmatprep.subr.mxu0 %v121
    %432 = vmatpush1.msra.mxu0 %v120
    %433 = vmatprep.subr.mxu0 %v129
    %434 = vmatpush1.msra.mxu0 %v128
    %435 = vmatprep.subr.mxu0 %v137
    %436 = vmatpush1.msra.mxu0 %v136
    %437 = vmatprep.subr.mxu0 %v145
    %438 = vmatpush1.msra.mxu0 %v144
    %439 = vmatprep.subr.mxu0 %v153
    %440 = vmatpush1.msra.mxu0 %v152
    %441 = vmatprep.subr.mxu0 %v161
    %442 = vmatpush1.msra.mxu0 %v160
    %443 = vmatprep.subr.mxu0 %v169
    %444 = vmatpush1.msra.mxu0 %v168
    %445 = vmatprep.subr.mxu0 %v177
    %446 = vmatpush1.msra.mxu0 %v176
    %447 = vmatprep.subr.mxu0 %v185
    %448 = vmatpush1.msra.mxu0 %v184
    %449 = vmatprep.subr.mxu0 0.0
    %450 = vmatpush1.msra.mxu0 0.0
    %451 = vmatprep.subr.mxu0 0.0
    %452 = vmatpush1.msra.mxu0 0.0
    %453 = vmatprep.subr.mxu0 0.0
    %454 = vmatpush1.msra.mxu0 0.0
    %455 = vmatprep.subr.mxu0 0.0
    %456 = vmatpush1.msra.mxu0 0.0
    %457 = vmatprep.subr.mxu0 0.0
    %458 = vmatpush1.msra.mxu0 0.0
    %459 = vmatprep.subr.mxu0 0.0
    %460 = vmatpush1.msra.mxu0 0.0
    %461 = vmatprep.subr.mxu0 0.0
    %462 = vmatpush1.msra.mxu0 0.0
    %463 = vmatprep.subr.mxu0 0.0
    %464 = vmatpush1.msra.mxu0 0.0
    %465 = vmatprep.subr.mxu0 0.0
    %466 = vmatpush1.msra.mxu0 0.0
    %467 = vmatprep.subr.mxu0 0.0
    %468 = vmatpush1.msra.mxu0 0.0
    %469 = vmatprep.subr.mxu0 0.0
    %470 = vmatpush1.msra.mxu0 0.0
    %471 = vmatprep.subr.mxu0 0.0
    %472 = vmatpush1.msra.mxu0 0.0
    %473 = vmatprep.subr.mxu0 0.0
    %474 = vmatpush1.msra.mxu0 0.0
    %475 = vmatprep.subr.mxu0 0.0
    %476 = vmatpush1.msra.mxu0 0.0
    %477 = vmatprep.subr.mxu0 0.0
    %478 = vmatpush1.msra.mxu0 0.0
    %479 = vmatprep.subr.mxu0 0.0
    %480 = vmatpush1.msra.mxu0 0.0
    %481 = vmatprep.mubr.f32.mxu0 0.0
    %482 = vmatmul.mubr.f32.gmra.mrb[0].mxu0 %v56
    %v483 = vpop.f32.mrb[0].mxu0
    %v484 = vadd.f32 0.0, %v483
    %v485 = vpop.f32.mrb[0].mxu0
    %v486 = vadd.f32 0.0, %v485
    %487 = vmatprep.mubr.f32.mxu0 0.0
    %488 = vmatmul.mubr.f32.gmra.mrb[0].mxu0 %v57
    %v489 = vpop.f32.mrb[0].mxu0
    %v490 = vadd.f32 0.0, %v489
    %v491 = vpop.f32.mrb[0].mxu0
    %v492 = vadd.f32 0.0, %v491
    %493 = vdwg.mxu0
    %v494 = vxor.u32 %v253, 2147483648
    %v495 = vxor.u32 %v255, 2147483648
    %v496 = vxor.u32 %v330, 2147483648
    %v497 = vxor.u32 %v332, 2147483648
    %v498 = vxor.u32 %v259, 2147483648
    %v499 = vxor.u32 %v261, 2147483648
    %v500 = vxor.u32 %v336, 2147483648
    %v501 = vxor.u32 %v338, 2147483648
    %v502 = vmul.f32 %v494, 1.442695
    %v503 = vpow.pop %v502
    %v504 = vmul.f32 %v495, 1.442695
    %v505 = vpow.pop %v504
    %v506 = vmul.f32 %v496, 1.442695
    %v507 = vpow.pop %v506
    %v508 = vmul.f32 %v497, 1.442695
    %v509 = vpow.pop %v508
    %v510 = vmul.f32 %v498, 1.442695
    %v511 = vpow.pop %v510
    %v512 = vmul.f32 %v499, 1.442695
    %v513 = vpow.pop %v512
    %v514 = vmul.f32 %v500, 1.442695
    %v515 = vpow.pop %v514
    %v516 = vmul.f32 %v501, 1.442695
    %v517 = vpow.pop %v516
    %v518 = vadd.f32 %v503, 1.0
    %v519 = vadd.f32 %v505, 1.0
    %v520 = vadd.f32 %v507, 1.0
    %v521 = vadd.f32 %v509, 1.0
    %v522 = vadd.f32 %v511, 1.0
    %v523 = vadd.f32 %v513, 1.0
    %v524 = vadd.f32 %v515, 1.0
    %v525 = vadd.f32 %v517, 1.0
    %v526 = vrcp.pop %v518
    %v527 = vmul.f32 1.0, %v526
    %v528 = vrcp.pop %v519
    %v529 = vmul.f32 1.0, %v528
    %v530 = vrcp.pop %v520
    %v531 = vmul.f32 1.0, %v530
    %v532 = vrcp.pop %v521
    %v533 = vmul.f32 1.0, %v532
    %v534 = vrcp.pop %v522
    %v535 = vmul.f32 1.0, %v534
    %v536 = vrcp.pop %v523
    %v537 = vmul.f32 1.0, %v536
    %v538 = vrcp.pop %v524
    %v539 = vmul.f32 1.0, %v538
    %v540 = vrcp.pop %v525
    %v541 = vmul.f32 1.0, %v540
    %v542 = vmul.f32 %v253, %v527
    %v543 = vmul.f32 %v255, %v529
    %v544 = vmul.f32 %v330, %v531
    %v545 = vmul.f32 %v332, %v533
    %v546 = vmul.f32 %v259, %v535
    %v547 = vmul.f32 %v261, %v537
    %v548 = vmul.f32 %v336, %v539
    %v549 = vmul.f32 %v338, %v541
    %v550 = vmul.f32 %v542, %v407
    %v551 = vmul.f32 %v543, %v409
    %v552 = vmul.f32 %v544, %v484
    %v553 = vmul.f32 %v545, %v486
    %v554 = vmul.f32 %v546, %v413
    %v555 = vmul.f32 %v547, %v415
    %v556 = vmul.f32 %v548, %v490
    %v557 = vmul.f32 %v549, %v492
    %v558 = vld [vmem:[#allocation7] sm:$0xff]
    %v559 = vld [vmem:[#allocation7 + $0x8] sm:$0xff]
    %v560 = vld [vmem:[#allocation7 + $0x10] sm:$0xff]
    %v561 = vld [vmem:[#allocation7 + $0x18] sm:$0xff]
    %v562 = vld [vmem:[#allocation7 + $0x20] sm:$0xff]
    %v563 = vld [vmem:[#allocation7 + $0x28] sm:$0xff]
    %v564 = vld [vmem:[#allocation7 + $0x30] sm:$0xff]
    %v565 = vld [vmem:[#allocation7 + $0x38] sm:$0xff]
    %v566 = vld [vmem:[#allocation7 + $0x40] sm:$0xff]
    %v567 = vld [vmem:[#allocation7 + $0x48] sm:$0xff]
    %v568 = vld [vmem:[#allocation7 + $0x50] sm:$0xff]
    %v569 = vld [vmem:[#allocation7 + $0x58] sm:$0xff]
    %v570 = vld [vmem:[#allocation7 + $0x60] sm:$0xff]
    %v571 = vld [vmem:[#allocation7 + $0x68] sm:$0xff]
    %v572 = vld [vmem:[#allocation7 + $0x70] sm:$0xff]
    %v573 = vld [vmem:[#allocation7 + $0x78] sm:$0xff]
    %v574 = vld [vmem:[#allocation7 + $0x80] sm:$0xff]
    %v575 = vld [vmem:[#allocation7 + $0x88] sm:$0xff]
    %v576 = vld [vmem:[#allocation7 + $0x90] sm:$0xff]
    %v577 = vld [vmem:[#allocation7 + $0x98] sm:$0xff]
    %v578 = vld [vmem:[#allocation7 + $0xa0] sm:$0xff]
    %v579 = vld [vmem:[#allocation7 + $0xa8] sm:$0xff]
    %v580 = vld [vmem:[#allocation7 + $0xb0] sm:$0xff]
    %v581 = vld [vmem:[#allocation7 + $0xb8] sm:$0xff]
    %v582 = vld [vmem:[#allocation7 + $0xc0] sm:$0xff]
    %v583 = vld [vmem:[#allocation7 + $0xc8] sm:$0xff]
    %v584 = vld [vmem:[#allocation7 + $0xd0] sm:$0xff]
    %v585 = vld [vmem:[#allocation7 + $0xd8] sm:$0xff]
    %v586 = vld [vmem:[#allocation7 + $0xe0] sm:$0xff]
    %v587 = vld [vmem:[#allocation7 + $0xe8] sm:$0xff]
    %v588 = vld [vmem:[#allocation7 + $0xf0] sm:$0xff]
    %v589 = vld [vmem:[#allocation7 + $0xf8] sm:$0xff]
    %v590 = vld [vmem:[#allocation7 + $0x100] sm:$0xff]
    %v591 = vld [vmem:[#allocation7 + $0x108] sm:$0xff]
    %v592 = vld [vmem:[#allocation7 + $0x110] sm:$0xff]
    %v593 = vld [vmem:[#allocation7 + $0x118] sm:$0xff]
    %v594 = vld [vmem:[#allocation7 + $0x120] sm:$0xff]
    %v595 = vld [vmem:[#allocation7 + $0x128] sm:$0xff]
    %v596 = vld [vmem:[#allocation7 + $0x130] sm:$0xff]
    %v597 = vld [vmem:[#allocation7 + $0x138] sm:$0xff]
    %v598 = vld [vmem:[#allocation7 + $0x140] sm:$0xff]
    %v599 = vld [vmem:[#allocation7 + $0x148] sm:$0xff]
    %v600 = vld [vmem:[#allocation7 + $0x150] sm:$0xff]
    %v601 = vld [vmem:[#allocation7 + $0x158] sm:$0xff]
    %v602 = vld [vmem:[#allocation7 + $0x160] sm:$0xff]
    %v603 = vld [vmem:[#allocation7 + $0x168] sm:$0xff]
    %v604 = vld [vmem:[#allocation7 + $0x170] sm:$0xff]
    %v605 = vld [vmem:[#allocation7 + $0x178] sm:$0xff]
    %v606 = vld [vmem:[#allocation7 + $0x180] sm:$0xff]
    %v607 = vld [vmem:[#allocation7 + $0x188] sm:$0xff]
    %v608 = vld [vmem:[#allocation7 + $0x190] sm:$0xff]
    %v609 = vld [vmem:[#allocation7 + $0x198] sm:$0xff]
    %v610 = vld [vmem:[#allocation7 + $0x1a0] sm:$0xff]
    %v611 = vld [vmem:[#allocation7 + $0x1a8] sm:$0xff]
    %v612 = vld [vmem:[#allocation7 + $0x1b0] sm:$0xff]
    %v613 = vld [vmem:[#allocation7 + $0x1b8] sm:$0xff]
    %v614 = vld [vmem:[#allocation7 + $0x1c0] sm:$0xff]
    %v615 = vld [vmem:[#allocation7 + $0x1c8] sm:$0xff]
    %v616 = vld [vmem:[#allocation7 + $0x1d0] sm:$0xff]
    %v617 = vld [vmem:[#allocation7 + $0x1d8] sm:$0xff]
    %v618 = vld [vmem:[#allocation7 + $0x1e0] sm:$0xff]
    %v619 = vld [vmem:[#allocation7 + $0x1e8] sm:$0xff]
    %v620 = vld [vmem:[#allocation7 + $0x1f0] sm:$0xff]
    %v621 = vld [vmem:[#allocation7 + $0x1f8] sm:$0xff]
    %622 = vmatprep.subr.mxu0 0.0
    %623 = vmatpush1.msra.mxu0 %v558
    %624 = vmatprep.subr.mxu0 0.0
    %625 = vmatpush1.msra.mxu0 %v559
    %626 = vmatprep.subr.mxu0 0.0
    %627 = vmatpush1.msra.mxu0 %v560
    %628 = vmatprep.subr.mxu0 0.0
    %629 = vmatpush1.msra.mxu0 %v561
    %630 = vmatprep.subr.mxu0 0.0
    %631 = vmatpush1.msra.mxu0 %v562
    %632 = vmatprep.subr.mxu0 0.0
    %633 = vmatpush1.msra.mxu0 %v563
    %634 = vmatprep.subr.mxu0 0.0
    %635 = vmatpush1.msra.mxu0 %v564
    %636 = vmatprep.subr.mxu0 0.0
    %637 = vmatpush1.msra.mxu0 %v565
    %638 = vmatprep.subr.mxu0 0.0
    %639 = vmatpush1.msra.mxu0 %v566
    %640 = vmatprep.subr.mxu0 0.0
    %641 = vmatpush1.msra.mxu0 %v567
    %642 = vmatprep.subr.mxu0 0.0
    %643 = vmatpush1.msra.mxu0 %v568
    %644 = vmatprep.subr.mxu0 0.0
    %645 = vmatpush1.msra.mxu0 %v569
    %646 = vmatprep.subr.mxu0 0.0
    %647 = vmatpush1.msra.mxu0 %v570
    %648 = vmatprep.subr.mxu0 0.0
    %649 = vmatpush1.msra.mxu0 %v571
    %650 = vmatprep.subr.mxu0 0.0
    %651 = vmatpush1.msra.mxu0 %v572
    %652 = vmatprep.subr.mxu0 0.0
    %653 = vmatpush1.msra.mxu0 %v573
    %654 = vmatprep.subr.mxu0 0.0
    %655 = vmatpush1.msra.mxu0 %v574
    %656 = vmatprep.subr.mxu0 0.0
    %657 = vmatpush1.msra.mxu0 %v575
    %658 = vmatprep.subr.mxu0 0.0
    %659 = vmatpush1.msra.mxu0 %v576
    %660 = vmatprep.subr.mxu0 0.0
    %661 = vmatpush1.msra.mxu0 %v577
    %662 = vmatprep.subr.mxu0 0.0
    %663 = vmatpush1.msra.mxu0 %v578
    %664 = vmatprep.subr.mxu0 0.0
    %665 = vmatpush1.msra.mxu0 %v579
    %666 = vmatprep.subr.mxu0 0.0
    %667 = vmatpush1.msra.mxu0 %v580
    %668 = vmatprep.subr.mxu0 0.0
    %669 = vmatpush1.msra.mxu0 %v581
    %670 = vmatprep.subr.mxu0 0.0
    %671 = vmatpush1.msra.mxu0 %v582
    %672 = vmatprep.subr.mxu0 0.0
    %673 = vmatpush1.msra.mxu0 %v583
    %674 = vmatprep.subr.mxu0 0.0
    %675 = vmatpush1.msra.mxu0 %v584
    %676 = vmatprep.subr.mxu0 0.0
    %677 = vmatpush1.msra.mxu0 %v585
    %678 = vmatprep.subr.mxu0 0.0
    %679 = vmatpush1.msra.mxu0 %v586
    %680 = vmatprep.subr.mxu0 0.0
    %681 = vmatpush1.msra.mxu0 %v587
    %682 = vmatprep.subr.mxu0 0.0
    %683 = vmatpush1.msra.mxu0 %v588
    %684 = vmatprep.subr.mxu0 0.0
    %685 = vmatpush1.msra.mxu0 %v589
    %686 = vmatprep.mubr.f32.mxu0 %v551
    %687 = vmatmul.mubr.f32.gmra.mrb[0].mxu0 %v550
    %v688 = vpop.f32.mrb[0].mxu0
    %v689 = vadd.f32 0.0, %v688
    %v690 = vpop.f32.mrb[0].mxu0
    %691 = vmatprep.mubr.f32.mxu0 %v555
    %692 = vmatmul.mubr.f32.gmra.mrb[0].mxu0 %v554
    %v693 = vpop.f32.mrb[0].mxu0
    %v694 = vadd.f32 0.0, %v693
    %v695 = vpop.f32.mrb[0].mxu0
    %696 = vdwg.mxu0
    %697 = vmatprep.subr.mxu0 0.0
    %698 = vmatpush1.msra.mxu0 %v590
    %699 = vmatprep.subr.mxu0 0.0
    %700 = vmatpush1.msra.mxu0 %v591
    %701 = vmatprep.subr.mxu0 0.0
    %702 = vmatpush1.msra.mxu0 %v592
    %703 = vmatprep.subr.mxu0 0.0
    %704 = vmatpush1.msra.mxu0 %v593
    %705 = vmatprep.subr.mxu0 0.0
    %706 = vmatpush1.msra.mxu0 %v594
    %707 = vmatprep.subr.mxu0 0.0
    %708 = vmatpush1.msra.mxu0 %v595
    %709 = vmatprep.subr.mxu0 0.0
    %710 = vmatpush1.msra.mxu0 %v596
    %711 = vmatprep.subr.mxu0 0.0
    %712 = vmatpush1.msra.mxu0 %v597
    %713 = vmatprep.subr.mxu0 0.0
    %714 = vmatpush1.msra.mxu0 %v598
    %715 = vmatprep.subr.mxu0 0.0
    %716 = vmatpush1.msra.mxu0 %v599
    %717 = vmatprep.subr.mxu0 0.0
    %718 = vmatpush1.msra.mxu0 %v600
    %719 = vmatprep.subr.mxu0 0.0
    %720 = vmatpush1.msra.mxu0 %v601
    %721 = vmatprep.subr.mxu0 0.0
    %722 = vmatpush1.msra.mxu0 %v602
    %723 = vmatprep.subr.mxu0 0.0
    %724 = vmatpush1.msra.mxu0 %v603
    %725 = vmatprep.subr.mxu0 0.0
    %726 = vmatpush1.msra.mxu0 %v604
    %727 = vmatprep.subr.mxu0 0.0
    %728 = vmatpush1.msra.mxu0 %v605
    %729 = vmatprep.subr.mxu0 0.0
    %730 = vmatpush1.msra.mxu0 %v606
    %731 = vmatprep.subr.mxu0 0.0
    %732 = vmatpush1.msra.mxu0 %v607
    %733 = vmatprep.subr.mxu0 0.0
    %734 = vmatpush1.msra.mxu0 %v608
    %735 = vmatprep.subr.mxu0 0.0
    %736 = vmatpush1.msra.mxu0 %v609
    %737 = vmatprep.subr.mxu0 0.0
    %738 = vmatpush1.msra.mxu0 %v610
    %739 = vmatprep.subr.mxu0 0.0
    %740 = vmatpush1.msra.mxu0 %v611
    %741 = vmatprep.subr.mxu0 0.0
    %742 = vmatpush1.msra.mxu0 %v612
    %743 = vmatprep.subr.mxu0 0.0
    %744 = vmatpush1.msra.mxu0 %v613
    %745 = vmatprep.subr.mxu0 0.0
    %746 = vmatpush1.msra.mxu0 %v614
    %747 = vmatprep.subr.mxu0 0.0
    %748 = vmatpush1.msra.mxu0 %v615
    %749 = vmatprep.subr.mxu0 0.0
    %750 = vmatpush1.msra.mxu0 %v616
    %751 = vmatprep.subr.mxu0 0.0
    %752 = vmatpush1.msra.mxu0 %v617
    %753 = vmatprep.subr.mxu0 0.0
    %754 = vmatpush1.msra.mxu0 %v618
    %755 = vmatprep.subr.mxu0 0.0
    %756 = vmatpush1.msra.mxu0 %v619
    %757 = vmatprep.subr.mxu0 0.0
    %758 = vmatpush1.msra.mxu0 %v620
    %759 = vmatprep.subr.mxu0 0.0
    %760 = vmatpush1.msra.mxu0 %v621
    %761 = vmatprep.mubr.f32.mxu0 %v553
    %762 = vmatmul.mubr.f32.gmra.mrb[0].mxu0 %v552
    %v763 = vpop.f32.mrb[0].mxu0
    %v764 = vadd.f32 %v689, %v763
    %v765 = vpop.f32.mrb[0].mxu0
    %766 = vmatprep.mubr.f32.mxu0 %v557
    %767 = vmatmul.mubr.f32.gmra.mrb[0].mxu0 %v556
    %v768 = vpop.f32.mrb[0].mxu0
    %v769 = vadd.f32 %v694, %v768
    %v770 = vpop.f32.mrb[0].mxu0
    %771 = vdwg.mxu0
    %772 = vst [vmem:[#allocation8] sm:$0xff] %v764
    %773 = vst [vmem:[#allocation8 + $0x8] sm:$0xff] %v769
    // Predicated region
    $region26: #{tpu_custom_call.1} parent=1 // pred_check
      _
    $region27: #{tpu_custom_call.1} parent=1 // pred_check_branch
      %775 = sbr.rel (0) target = $region29
    $region28: #{tpu_custom_call.1} parent=1 // pred_region
      %s777 = ssub.s32 256, 256
      %778 = vsyncadd [#allocation4], %s777
      %s779 = sshll.u32 [#allocation8], 4
      %s780 = int_to_ptr.vmem [resolvable:$true] %s779
      %785 = dma.vmem_to_hbm [thread:$0]  %s780, 256, %s3, [#allocation4], 128, 128, 8
    $region29: #{tpu_custom_call.1} parent=1 // pred_fallthru
      _
    // Predicated region
    $region30: #{tpu_custom_call.1} parent=1 // pred_check
      _
    $region31: #{tpu_custom_call.1} parent=1 // pred_check_branch
      %787 = sbr.rel (0) target = $region33
    $region32: #{tpu_custom_call.1} parent=1 // pred_region
      %788 = dma.done [#allocation4], 256
    $region33: #{tpu_custom_call.1} parent=1 // pred_fallthru
      _
    %789 = vsyncpa [#allocation3], 1
    %790 = vsyncpa [#allocation6], 1
    %791 = vsyncpa [#allocation4], 1

</llo_original>
